<compile_context>
chip_gen: v5e
topology: v5e:2x2
jax: 0.10.0
libtpu: 0.0.40
codegen_flags: <defaults>
</compile_context>

<pallas_src>
import jax
import jax.numpy as jnp
import numpy as np
from jax.experimental import pallas as pl
from jax.experimental.pallas import tpu as pltpu


def _round_up(x, m):
    return ((x + m - 1) // m) * m


def kron_jnp(a, b):
    """JAX transcription of the PyTorch kron() helper."""
    m, n = a.shape[-2:]
    p, q = b.shape[-2:]
    res = a[..., :, None, :, None] * b[..., None, :, None, :]
    return res.reshape(a.shape[:-2] + (m * p, n * q))


def make_cg_matrices(L, key):
    """Deterministic synthetic stand-in for ClebschGordanMatrices(L).calculate().

    Returns a list of ((l1, l2), ls, cg) with cg of shape ((L+1)^2, (2l1+1)(2l2+1)),
    nonzero only on row blocks l^2:(l+1)^2 for l in ls (mimics real CG structure).
    """
    # TODO(synk): real Clebsch-Gordan coefficient *values* are not reproduced here;
    # only the shapes / block structure of the forward pass are (synthetic init).
    mats = []
    for l1 in range(L + 1):
        for l2 in range(l1, L + 1):
            ls = list(range(abs(l1 - l2), min(l1 + l2, L) + 1))
            d = (2 * l1 + 1) * (2 * l2 + 1)
            cg = jnp.zeros(((L + 1) ** 2, d), jnp.float32)
            kp = jax.random.fold_in(key, l1 * (L + 1) + l2)
            for l in ls:
                kl = jax.random.fold_in(kp, l)
                cg = cg.at[l * l:(l + 1) * (l + 1), :].set(
                    jax.random.normal(kl, (2 * l + 1, d), jnp.float32))
            mats.append(((l1, l2), ls, cg))
    return mats


def _fused_cg_kernel(w_ref, g_ref, o_ref):
    # One MXU matmul covers every (l1, l2) pair and every output degree l.
    o_ref[...] = jnp.dot(w_ref[...], g_ref[...], preferred_element_type=jnp.float32)


def build_cg_transform(L, cg_mats, T):
    """Precompute constant operands (depend only on L / CG structure / T) and
    return a jitted forward(clms) -> [H_l for l in 0..L]."""
    lsize = (L + 1) ** 2
    TT = T * T
    TT_PAD = _round_up(TT, 128)

    # ---- constant bookkeeping for the shared contraction axis k = (pair, i, j) ----
    idx1, idx2, offs = [], [], []
    off = 0
    for (l1, l2), ls, _ in cg_mats:
        offs.append(off)
        d1, d2 = 2 * l1 + 1, 2 * l2 + 1
        for i in range(d1):
            for j in range(d2):
                idx1.append(l1 * l1 + i)   # clms row of the left kron factor
                idx2.append(l2 * l2 + j)   # clms row of the right kron factor
        off += d1 * d2
    K = off
    K_PAD = _round_up(K, 8)

    # ---- constant fused CG matrix W: rows grouped by l, then by pair order ----
    row_blocks = []
    out_info = []                       # per l: (row_start, #pairs containing l)
    r = 0
    for l in range(L + 1):
        start, cnt = r, 0
        nl = 2 * l + 1
        for p, ((l1, l2), ls, cg) in enumerate(cg_mats):
            if l not in ls:
                continue
            cg_np = np.asarray(cg, dtype=np.float32)
            d = (2 * l1 + 1) * (2 * l2 + 1)
            blk = np.zeros((nl, K_PAD), np.float32)
            blk[:, offs[p]:offs[p] + d] = cg_np[l * l:(l + 1) ** 2, :]
            row_blocks.append(blk)
            r += nl
            cnt += 1
        out_info.append((start, cnt))
    R = r
    R_PAD = _round_up(R, 8)
    W_np = np.zeros((R_PAD, K_PAD), np.float32)
    W_np[:R] = np.concatenate(row_blocks, axis=0)

    W = jnp.asarray(W_np)                                   # built once, reused
    idx1_j = jnp.asarray(idx1, dtype=jnp.int32)
    idx2_j = jnp.asarray(idx2, dtype=jnp.int32)

    # Tile the TT (output-column) axis only when T grows, to keep the double-
    # buffered G/out blocks well under v7x's 64 MiB VMEM.  Single step here.
    TT_TILE = 128
    for cand in (2048, 1024, 512, 256, 128):
        if TT_PAD % cand == 0:
            TT_TILE = cand
            break

    fused = pl.pallas_call(
        _fused_cg_kernel,
        out_shape=jax.ShapeDtypeStruct((R_PAD, TT_PAD), jnp.float32),
        grid=(TT_PAD // TT_TILE,),
        in_specs=[
            pl.BlockSpec((R_PAD, K_PAD), lambda j: (0, 0)),     # W (constant)
            pl.BlockSpec((K_PAD, TT_TILE), lambda j: (0, j)),   # G (kron rows)
        ],
        out_specs=pl.BlockSpec((R_PAD, TT_TILE), lambda j: (0, j)),
        compiler_params=pltpu.CompilerParams(
            dimension_semantics=("parallel",)),
    )

    def forward(clms):
        assert clms.shape == (lsize, T), clms.shape
        clms = clms.astype(jnp.float32)
        # Dense per-pair Kronecker rows: g[k, s*T + t] = clms[idx1[k], s] * clms[idx2[k], t]
        u = jnp.take(clms, idx1_j, axis=0)                    # (K, T)
        v = jnp.take(clms, idx2_j, axis=0)                    # (K, T)
        g = (u[:, :, None] * v[:, None, :]).reshape(K, TT)    # (K, TT), exact f32
        g_pad = jnp.zeros((K_PAD, TT_PAD), jnp.float32).at[:K, :TT].set(g)

        out = fused(W, g_pad)                                 # (R_PAD, TT_PAD)

        # Epilogue: rows are pre-grouped by l, so one slice + reshape/transpose
        # per l reproduces torch.cat(temp[l], dim=1).
        hls = []
        for l in range(L + 1):
            start, cnt = out_info[l]
            nl = 2 * l + 1
            blk = out[start:start + cnt * nl, :TT]            # (cnt*nl, TT)
            hls.append(
                blk.reshape(cnt, nl, TT).transpose(1, 0, 2).reshape(nl, cnt * TT))
        return hls

    return jax.jit(forward)


def cg_transform_reference(clms, L, cg_mats):
    """Pure-JAX transcription of the PyTorch forward (for verification)."""
    lsize = (L + 1) ** 2
    T = clms.shape[1]
    Gs = kron_jnp(clms, clms).reshape(lsize, lsize, T * T)
    temp = [[] for _ in range(L + 1)]
    for (l1, l2), ls, cg in cg_mats:
        l1l2dim = (2 * l1 + 1) * (2 * l2 + 1)
        g = Gs[l1 * l1:(l1 + 1) ** 2, l2 * l2:(l2 + 1) ** 2, :].reshape(l1l2dim, T * T)
        prod = cg @ g
        for l in ls:
            temp[l].append(prod[l * l:(l + 1) ** 2, :])
    return [jnp.concatenate(temp[l], axis=1) for l in range(L + 1)]


if __name__ == "__main__":
    L = 2                       # spherical-harmonic truncation
    T = 8                       # number of "channels" per clm
    lsize = (L + 1) ** 2        # 9

    key = jax.random.PRNGKey(0)
    k_clms, k_cg = jax.random.split(key)
    clms = jax.random.normal(k_clms, (lsize, T), jnp.float32)
    cg_mats = make_cg_matrices(L, k_cg)

    forward = build_cg_transform(L, cg_mats, T)   # constants hoisted out of the call
    Hls = forward(clms)
    Hls = [jax.block_until_ready(h) for h in Hls]

    Hls_ref = cg_transform_reference(clms, L, cg_mats)
    for h, h_ref in zip(Hls, Hls_ref):
        assert h.shape == h_ref.shape, (h.shape, h_ref.shape)
        np.testing.assert_allclose(np.asarray(h), np.asarray(h_ref),
                                   rtol=1e-5, atol=1e-5)

    print("KERNEL_OK")
</pallas_src>

<mosaic_0001>
module attributes {stable_mosaic.version = 11 : i64} {
  func.func @_fused_cg_kernel(%arg0: i32, %arg1: memref<40x64xf32, #tpu.memory_space<vmem>>, %arg2: memref<64x128xf32, #tpu.memory_space<vmem>>, %arg3: memref<40x128xf32, #tpu.memory_space<vmem>>) attributes {dimension_semantics = [#tpu.dimension_semantics<parallel>], iteration_bounds = array<i64: 1>, scalar_prefetch = 0 : i64, scratch_operands = 0 : i64, tpu.core_type = #tpu.core_type<tc>, window_params = [{pipeline_mode = #tpu.pipeline_mode<synchronous>, transform_indices = @transform_0, window_bounds = array<i64: 40, 64>}, {transform_indices = @transform_1, window_bounds = array<i64: 64, 128>}, {transform_indices = @transform_2, window_bounds = array<i64: 40, 128>}]} {
    %c0 = arith.constant 0 : index
    %c0_0 = arith.constant 0 : index
    %0 = vector.load %arg1[%c0, %c0_0] : memref<40x64xf32, #tpu.memory_space<vmem>>, vector<40x64xf32>
    %c0_1 = arith.constant 0 : index
    %c0_2 = arith.constant 0 : index
    %1 = vector.load %arg2[%c0_1, %c0_2] : memref<64x128xf32, #tpu.memory_space<vmem>>, vector<64x128xf32>
    %cst = arith.constant dense<0.000000e+00> : vector<40x128xf32>
    %2 = tpu.matmul %0, %1, %cst {dimension_numbers = #tpu.dot_dimension_numbers<[1], [0], [0], [1], [0, 0, 1, 1], [], []>} : vector<40x64xf32>, vector<64x128xf32>, vector<40x128xf32> -> vector<40x128xf32>
    %c0_3 = arith.constant 0 : index
    %c0_4 = arith.constant 0 : index
    %3 = vector.load %arg3[%c0_3, %c0_4] : memref<40x128xf32, #tpu.memory_space<vmem>>, vector<40x128xf32>
    tpu.vector_store %arg3[%c0_3, %c0_4], %2 {strides = array<i32>} : memref<40x128xf32, #tpu.memory_space<vmem>>, vector<40x128xf32>,
    return
  }
  func.func @transform_0(%arg0: i32) -> (i32, i32) {
    %c0_i32 = arith.constant 0 : i32
    %c0_i32_0 = arith.constant 0 : i32
    %c0_i32_1 = arith.constant 0 : i32
    return %c0_i32, %c0_i32_0 : i32, i32
  }
  func.func @transform_1(%arg0: i32) -> (i32, i32) {
    %c0_i32 = arith.constant 0 : i32
    %c0_i32_0 = arith.constant 0 : i32
    return %c0_i32, %arg0 : i32, i32
  }
  func.func @transform_2(%arg0: i32) -> (i32, i32) {
    %c0_i32 = arith.constant 0 : i32
    %c0_i32_0 = arith.constant 0 : i32
    return %c0_i32, %arg0 : i32, i32
  }
}

</mosaic_0001>

<llo_original>
// kernel: forward.1
$region0: #{forward.1}
  #allocation0 [shape = 'u32[]', space=smem, size = 0x4, offset = 0x4, fixed_abs, tag = 'smem constant byte address 0x4 - core index']
  #allocation1 [shape = 'u32[72,128]{1,0:T(1,128)}', space=vmem, size = 0x9000, scoped, tag = 'internal scratch']
  %s0 = inlined_call_operand.vmem [shape: f32[40,64], index: 0, kind: input, shape index: {}]
  %s1 = inlined_call_operand.vmem [shape: f32[64,128], index: 1, kind: input, shape index: {}]
  %s2 = inlined_call_operand.vmem [shape: f32[40,128], index: 2, kind: output, shape index: {}]
  %s3 = sld [smem:[#allocation0]]
  $region18: #{forward.1} parent=0
    _
  %s5 = ssub.s32 1, %s3
  %s6 = scalar_select 0, %s5, %s3
  // Predicated region
  $region2: #{forward.1} parent=0 // pred_check
    _
  $region3: #{forward.1} parent=0 // pred_check_branch
    %8 = sbr.rel (0) target = $region5
  $region4: #{forward.1} parent=0 // pred_region
    _
  $region5: #{forward.1} parent=0 // pred_fallthru
    _
  // Predicated region
  $region6: #{forward.1} parent=0 // pred_check
    _
  $region7: #{forward.1} parent=0 // pred_check_branch
    %10 = sbr.rel (0) target = $region9
  $region8: #{forward.1} parent=0 // pred_region
    _
  $region9: #{forward.1} parent=0 // pred_fallthru
    _
  %v11 = vld [vmem:[%s0] sm:$0xff]
  %v12 = vld [vmem:[%s0 + $0x8] sm:$0xff]
  %v13 = vld [vmem:[%s0 + $0x10] sm:$0xff]
  %v14 = vld [vmem:[%s0 + $0x18] sm:$0xff]
  %v15 = vld [vmem:[%s0 + $0x20] sm:$0xff]
  %v16 = vld [vmem:[%s1] sm:$0xff]
  %v17 = vld [vmem:[%s1 + $0x8] sm:$0xff]
  %v18 = vld [vmem:[%s1 + $0x10] sm:$0xff]
  %v19 = vld [vmem:[%s1 + $0x18] sm:$0xff]
  %v20 = vld [vmem:[%s1 + $0x20] sm:$0xff]
  %v21 = vld [vmem:[%s1 + $0x28] sm:$0xff]
  %v22 = vld [vmem:[%s1 + $0x30] sm:$0xff]
  %v23 = vld [vmem:[%s1 + $0x38] sm:$0xff]
  %vm24 = vcmask 523264
  %v26 = vsel %vm24, %v11, 0
  %v29 = vsel %vm24, %v12, 0
  %v32 = vsel %vm24, %v13, 0
  %v35 = vsel %vm24, %v14, 0
  %v38 = vsel %vm24, %v15, 0
  %40 = vmatpush.msra.mxu0 0.0
  %41 = vmatpush.msra.mxu0 0.0
  %42 = vmatpush.msra.mxu0 0.0
  %43 = vmatpush.msra.mxu0 0.0
  %44 = vmatpush.msra.mxu0 0.0
  %45 = vmatpush.msra.mxu0 0.0
  %46 = vmatpush.msra.mxu0 0.0
  %47 = vmatpush.msra.mxu0 0.0
  %48 = vmatpush.msra.mxu0 %v23
  %49 = vmatpush.msra.mxu0 %v22
  %50 = vmatpush.msra.mxu0 %v21
  %51 = vmatpush.msra.mxu0 %v20
  %52 = vmatpush.msra.mxu0 %v19
  %53 = vmatpush.msra.mxu0 %v18
  %54 = vmatpush.msra.mxu0 %v17
  %55 = vmatpush.msra.mxu0 %v16
  %56 = vmatmul.f32.gmra.mxu0 %v26
  %v57 = vpop.f32.mrf.mxu0
  %v58 = vadd.f32 0.0, %v57
  %59 = vmatmul.f32.gmra.mxu0 %v29
  %v60 = vpop.f32.mrf.mxu0
  %v61 = vadd.f32 0.0, %v60
  %62 = vmatmul.f32.gmra.mxu0 %v32
  %v63 = vpop.f32.mrf.mxu0
  %v64 = vadd.f32 0.0, %v63
  %65 = vmatmul.f32.gmra.mxu0 %v35
  %v66 = vpop.f32.mrf.mxu0
  %v67 = vadd.f32 0.0, %v66
  %68 = vmatmul.f32.gmra.mxu0 %v38
  %v69 = vpop.f32.mrf.mxu0
  %v70 = vadd.f32 0.0, %v69
  %71 = vdwg.mxu0
  %72 = vst [vmem:[%s2] sm:$0xff] %v58
  %73 = vst [vmem:[%s2 + $0x8] sm:$0xff] %v61
  %74 = vst [vmem:[%s2 + $0x10] sm:$0xff] %v64
  %75 = vst [vmem:[%s2 + $0x18] sm:$0xff] %v67
  %76 = vst [vmem:[%s2 + $0x20] sm:$0xff] %v70
  // Predicated region
  $region10: #{forward.1} parent=0 // pred_check
    _
  $region11: #{forward.1} parent=0 // pred_check_branch
    %78 = sbr.rel (0) target = $region13
  $region12: #{forward.1} parent=0 // pred_region
    _
  $region13: #{forward.1} parent=0 // pred_fallthru
    _
  // Predicated region
  $region14: #{forward.1} parent=0 // pred_check
    _
  $region15: #{forward.1} parent=0 // pred_check_branch
    %80 = sbr.rel (0) target = $region17
  $region16: #{forward.1} parent=0 // pred_region
    _
  $region17: #{forward.1} parent=0 // pred_fallthru
    _

</llo_original>
